<compile_context>
chip_gen: v5e
topology: v5e:2x2
jax: 0.10.0
libtpu: 0.0.40
codegen_flags: <defaults>
</compile_context>

<pallas_src>
import functools

import jax
import jax.numpy as jnp
from jax import lax
from jax.experimental import pallas as pl
from jax.experimental.pallas import tpu as pltpu


# Tile budget (bf16 inputs, f32 output, double-buffered input tiles):
#   W tile  512*4096*2 B = 4 MiB  x2 buffers
#   v tile  512*4096*2 B = 4 MiB  x2
#   o tile  512*512*4  B = 1 MiB  x2
#   bias    ~2 KiB
# ~= 18-20 MiB total: fits v7x's 64 MiB VMEM with headroom, well under v5e/v6e's
# 128 MiB, and is unlocked on v5e's 16 MiB scoped default by vmem_limit_bytes.
_M_TILE = 512          # hidden-axis tile
_N_TILE = 512          # batch-axis tile
_K_SINGLE_MAX = 4096   # keep the visible axis a single resident tile up to here
_K_TILE = 4096         # K tile depth when V is larger
_VMEM_LIMIT = 40 * 1024 * 1024


def _round_up(x, m):
    return ((x + m - 1) // m) * m


def _bm_kernel(w_ref, v_ref, b_ref, o_ref, *, precision):
    """One (hidden-tile, batch-tile) output block; visible/K axis is innermost."""
    k = pl.program_id(2)

    @pl.when(k == 0)
    def _init():
        o_ref[...] = jnp.zeros_like(o_ref)

    # (th, tk) . (tb, tk) -> (th, tb): contract the shared visible axis on the MXU,
    # accumulating directly into the resident f32 output block (no scratch buffer).
    o_ref[...] += lax.dot_general(
        w_ref[...], v_ref[...],
        dimension_numbers=(((1,), (1,)), ((), ())),
        preferred_element_type=jnp.float32,
        precision=precision,
    )

    @pl.when(k == pl.num_programs(2) - 1)
    def _finalize():
        # PyTorch broadcast quirk: the 1-D bias is added along the LAST axis of the
        # (H, B) result, i.e. b[j] goes to batch column j (requires B == H).
        o_ref[...] = jax.nn.sigmoid(o_ref[...] + b_ref[...])


def prepare_params(W, b, compute_dtype=jnp.bfloat16):
    """One-time parameter prep, hoisted out of the per-forward path.

    Casts W to the MXU input dtype and zero-pads its visible axis to a multiple of
    the K tile only when V > _K_SINGLE_MAX (K padding must be zero-filled because it
    feeds the accumulator).  Returns (W_c, b_row) where b_row is the f32 bias row.
    """
    H, V = W.shape
    W_c = W.astype(compute_dtype)
    if V > _K_SINGLE_MAX and V % _K_TILE != 0:
        W_c = jnp.pad(W_c, ((0, 0), (0, _round_up(V, _K_TILE) - V)))
    b_row = b.astype(jnp.float32).reshape(1, H)
    return W_c, b_row


@jax.jit
def boltzmann_forward(W_c, b_row, v):
    """sigmoid(W @ v.T + b) with PyTorch's broadcast of b along the last (batch) axis.

    W_c:   (H, V_pad) pre-cast (and pre-K-padded) weights from prepare_params().
    b_row: (1, H) float32 bias row.
    v:     (B, V) visible activations.
    Returns (H, B) float32.  Requires B == H (same constraint as the PyTorch module).
    """
    H = W_c.shape[0]
    B, V = v.shape
    if B != H:
        raise ValueError("PyTorch reference's bias broadcast requires batch == num_hidden")

    compute_dtype = W_c.dtype
    v_c = v.astype(compute_dtype)

    # K axis: single resident tile whenever it fits; otherwise 4096-deep tiles with
    # zero padding on the activations (W was already padded in prepare_params).
    if V <= _K_SINGLE_MAX:
        tk, K_pad = V, V
    else:
        tk = _K_TILE
        K_pad = _round_up(V, _K_TILE)
        if K_pad != V:
            v_c = jnp.pad(v_c, ((0, 0), (0, K_pad - V)))
    if W_c.shape[1] != K_pad:
        raise ValueError("W_c visible axis does not match; run prepare_params() on W first")

    # M/N axes: full-dim blocks for small problems, 512 tiles otherwise.  No B/H
    # padding: Pallas masks the partially out-of-bounds edge blocks, and any garbage
    # read there only lands in output rows/cols past H/B (no cross-tile reduction).
    th = H if H <= _M_TILE else _M_TILE
    tb = B if B <= _N_TILE else _N_TILE
    # v7x megacore: make sure the parallel grid axes expose >= 2 tiles when there is
    # enough batch work to split, so the second TensorCore is not left idle.
    if pl.cdiv(H, th) * pl.cdiv(B, tb) == 1 and B >= 256:
        tb = _round_up(pl.cdiv(B, 2), 128)

    grid = (pl.cdiv(H, th), pl.cdiv(B, tb), pl.cdiv(K_pad, tk))

    precision = (lax.Precision.HIGHEST if compute_dtype == jnp.float32
                 else lax.Precision.DEFAULT)

    itemsize = jnp.dtype(compute_dtype).itemsize
    cost = pl.CostEstimate(
        flops=2 * H * V * B,
        transcendentals=H * B,  # sigmoid exp
        bytes_accessed=itemsize * (H * V + B * V) + 4 * (H + H * B),
    )

    return pl.pallas_call(
        functools.partial(_bm_kernel, precision=precision),
        out_shape=jax.ShapeDtypeStruct((H, B), jnp.float32),
        grid_spec=pltpu.PrefetchScalarGridSpec(
            num_scalar_prefetch=0,
            grid=grid,
            in_specs=[
                # Weights (th, tk): block index is independent of the batch axis j,
                # so with a single K tile each W block is DMA'd once per hidden tile
                # and stays VMEM-resident across every batch tile (revisit skip).
                pl.BlockSpec((th, tk), lambda i, j, k: (i, k)),
                # Activations (tb, tk).
                pl.BlockSpec((tb, tk), lambda i, j, k: (j, k)),
                # Bias row (1, tb): lane-dense, indexed by the batch tile (PyTorch quirk).
                pl.BlockSpec((1, tb), lambda i, j, k: (0, j)),
            ],
            # Output block index is constant across k: the f32 block stays resident
            # in VMEM and doubles as the accumulator (no scratch).
            out_specs=pl.BlockSpec((th, tb), lambda i, j, k: (i, j)),
        ),
        compiler_params=pltpu.CompilerParams(
            dimension_semantics=("parallel", "parallel", "arbitrary"),
            vmem_limit_bytes=_VMEM_LIMIT,
        ),
        cost_estimate=cost,
    )(W_c, v_c, b_row)


if __name__ == "__main__":
    num_visible = 128
    num_hidden = 32
    batch = 32  # must equal num_hidden for the PyTorch forward's broadcast to be valid

    key = jax.random.PRNGKey(0)
    k_w, k_b, k_v = jax.random.split(key, 3)

    # Mirrors torch.randn(H, V) * 0.1; bias made non-zero so the broadcast path is exercised.
    W = 0.1 * jax.random.normal(k_w, (num_hidden, num_visible), dtype=jnp.float32)
    b = 0.1 * jax.random.normal(k_b, (num_hidden,), dtype=jnp.float32)
    v = jax.random.normal(k_v, (batch, num_visible), dtype=jnp.float32)

    # Pure-JAX reference (PyTorch broadcast: b added along the last / batch axis).
    ref = jax.nn.sigmoid(W @ v.T + b[None, :])

    # f32 path: numerically faithful to the PyTorch module (MXU precision=HIGHEST).
    W32, b32 = prepare_params(W, b, compute_dtype=jnp.float32)
    h_f32 = boltzmann_forward(W32, b32, v)
    jax.block_until_ready(h_f32)
    assert h_f32.shape == (num_hidden, batch)
    assert h_f32.dtype == jnp.float32
    assert jnp.allclose(h_f32, ref, atol=5e-5, rtol=5e-5)

    # bf16 MXU path (default): f32 accumulation + f32 epilogue, half the HBM traffic.
    Wbf, bbf = prepare_params(W, b, compute_dtype=jnp.bfloat16)
    h_bf16 = boltzmann_forward(Wbf, bbf, v)
    jax.block_until_ready(h_bf16)
    assert h_bf16.shape == (num_hidden, batch)
    assert h_bf16.dtype == jnp.float32
    assert jnp.allclose(h_bf16, ref, atol=5e-2, rtol=5e-2)

    print("KERNEL_OK")
</pallas_src>

<mosaic_0001>
module attributes {stable_mosaic.version = 11 : i64} {
  func.func @_bm_kernel(%arg0: i32, %arg1: i32, %arg2: i32, %arg3: memref<32x128xf32, #tpu.memory_space<vmem>>, %arg4: memref<32x128xf32, #tpu.memory_space<vmem>>, %arg5: memref<1x32xf32, #tpu.memory_space<vmem>>, %arg6: memref<32x32xf32, #tpu.memory_space<vmem>>) attributes {dimension_semantics = [#tpu.dimension_semantics<parallel>, #tpu.dimension_semantics<parallel>, #tpu.dimension_semantics<arbitrary>], iteration_bounds = array<i64: 1, 1, 1>, scalar_prefetch = 0 : i64, scratch_operands = 0 : i64, tpu.core_type = #tpu.core_type<tc>, window_params = [{transform_indices = @transform_0, window_bounds = array<i64: 32, 128>}, {transform_indices = @transform_1, window_bounds = array<i64: 32, 128>}, {transform_indices = @transform_2, window_bounds = array<i64: 1, 32>}, {transform_indices = @transform_3, window_bounds = array<i64: 32, 32>}]} {
    %c0_i32 = arith.constant 0 : i32
    %0 = arith.cmpi eq, %arg2, %c0_i32 : i32
    %1 = arith.extui %0 : i1 to i32
    %c0_i32_0 = arith.constant 0 : i32
    %2 = arith.cmpi ne, %1, %c0_i32_0 : i32
    scf.if %2 {
      %cst_10 = arith.constant 0.000000e+00 : f32
      %12 = vector.broadcast %cst_10 : f32 to vector<32x32xf32>
      %c0_11 = arith.constant 0 : index
      %c0_12 = arith.constant 0 : index
      %13 = vector.load %arg6[%c0_11, %c0_12] : memref<32x32xf32, #tpu.memory_space<vmem>>, vector<32x32xf32>
      tpu.vector_store %arg6[%c0_11, %c0_12], %12 {strides = array<i32>} : memref<32x32xf32, #tpu.memory_space<vmem>>, vector<32x32xf32>,
    } else {
    }
    %c0 = arith.constant 0 : index
    %c0_1 = arith.constant 0 : index
    %3 = vector.load %arg6[%c0, %c0_1] : memref<32x32xf32, #tpu.memory_space<vmem>>, vector<32x32xf32>
    %c0_2 = arith.constant 0 : index
    %c0_3 = arith.constant 0 : index
    %4 = vector.load %arg3[%c0_2, %c0_3] : memref<32x128xf32, #tpu.memory_space<vmem>>, vector<32x128xf32>
    %c0_4 = arith.constant 0 : index
    %c0_5 = arith.constant 0 : index
    %5 = vector.load %arg4[%c0_4, %c0_5] : memref<32x128xf32, #tpu.memory_space<vmem>>, vector<32x128xf32>
    %cst = arith.constant dense<0.000000e+00> : vector<32x32xf32>
    %6 = tpu.matmul %4, %5, %cst {dimension_numbers = #tpu.dot_dimension_numbers<[1], [1], [0], [0], [0, 0, 1, 0], [], []>, precision = #tpu.contract_precision<fp32>} : vector<32x128xf32>, vector<32x128xf32>, vector<32x32xf32> -> vector<32x32xf32>
    %7 = arith.addf %3, %6 : vector<32x32xf32>
    %c0_6 = arith.constant 0 : index
    %c0_7 = arith.constant 0 : index
    %8 = vector.load %arg6[%c0_6, %c0_7] : memref<32x32xf32, #tpu.memory_space<vmem>>, vector<32x32xf32>
    tpu.vector_store %arg6[%c0_6, %c0_7], %7 {strides = array<i32>} : memref<32x32xf32, #tpu.memory_space<vmem>>, vector<32x32xf32>,
    %c0_i32_8 = arith.constant 0 : i32
    %9 = arith.cmpi eq, %arg2, %c0_i32_8 : i32
    %10 = arith.extui %9 : i1 to i32
    %c0_i32_9 = arith.constant 0 : i32
    %11 = arith.cmpi ne, %10, %c0_i32_9 : i32
    scf.if %11 {
      %c0_10 = arith.constant 0 : index
      %c0_11 = arith.constant 0 : index
      %12 = vector.load %arg6[%c0_10, %c0_11] : memref<32x32xf32, #tpu.memory_space<vmem>>, vector<32x32xf32>
      %c0_12 = arith.constant 0 : index
      %c0_13 = arith.constant 0 : index
      %13 = vector.load %arg5[%c0_12, %c0_13] : memref<1x32xf32, #tpu.memory_space<vmem>>, vector<1x32xf32>
      %14 = vector.broadcast %13 : vector<1x32xf32> to vector<32x32xf32>
      %15 = arith.addf %12, %14 : vector<32x32xf32>
      %16 = arith.negf %15 : vector<32x32xf32>
      %17 = math.exp %16 : vector<32x32xf32>
      %cst_14 = arith.constant 1.000000e+00 : f32
      %18 = vector.broadcast %cst_14 : f32 to vector<32x32xf32>
      %19 = arith.addf %18, %17 : vector<32x32xf32>
      %20 = arith.divf %18, %19 : vector<32x32xf32>
      %c0_15 = arith.constant 0 : index
      %c0_16 = arith.constant 0 : index
      %21 = vector.load %arg6[%c0_15, %c0_16] : memref<32x32xf32, #tpu.memory_space<vmem>>, vector<32x32xf32>
      tpu.vector_store %arg6[%c0_15, %c0_16], %20 {strides = array<i32>} : memref<32x32xf32, #tpu.memory_space<vmem>>, vector<32x32xf32>,
    } else {
    }
    return
  }
  func.func @transform_0(%arg0: i32, %arg1: i32, %arg2: i32) -> (i32, i32) {
    %c0_i32 = arith.constant 0 : i32
    return %arg0, %arg2 : i32, i32
  }
  func.func @transform_1(%arg0: i32, %arg1: i32, %arg2: i32) -> (i32, i32) {
    %c0_i32 = arith.constant 0 : i32
    return %arg1, %arg2 : i32, i32
  }
  func.func @transform_2(%arg0: i32, %arg1: i32, %arg2: i32) -> (i32, i32) {
    %c0_i32 = arith.constant 0 : i32
    %c0_i32_0 = arith.constant 0 : i32
    return %c0_i32, %arg1 : i32, i32
  }
  func.func @transform_3(%arg0: i32, %arg1: i32, %arg2: i32) -> (i32, i32) {
    %c0_i32 = arith.constant 0 : i32
    return %arg0, %arg1 : i32, i32
  }
}

</mosaic_0001>

<llo_original>
// kernel: boltzmann_forward.1
$region0: #{boltzmann_forward.1}
  #allocation0 [shape = 'u32[]', space=smem, size = 0x4, offset = 0x4, fixed_abs, tag = 'smem constant byte address 0x4 - core index']
  #allocation1 [shape = 'u32[72,128]{1,0:T(1,128)}', space=vmem, size = 0x9000, scoped, tag = 'internal scratch']
  %s0 = inlined_call_operand.hbm [shape: f32[32,128], index: 0, kind: input, shape index: {}]
  %s1 = inlined_call_operand.hbm [shape: f32[32,128], index: 1, kind: input, shape index: {}]
  %s2 = inlined_call_operand.hbm [shape: f32[1,32], index: 2, kind: input, shape index: {}]
  %s3 = inlined_call_operand.hbm [shape: f32[32,32], index: 3, kind: output, shape index: {}]
  %s4 = sld [smem:[#allocation0]]
  $region42: #{boltzmann_forward.1} parent=0
    _
  %s6 = ssub.s32 1, %s4
  %s7 = scalar_select 0, %s6, %s4
  $region1: #{boltzmann_forward.1} parent=0
    #allocation2 [shape = 'u8[16384]{0}', space=vmem, size = 0x4000, scoped, tag = 'input window, operand 0, single buffered']
    #allocation3 [shape = 's32[1]{0}', space=sflag, size = 0x4, scoped, tag = 'scoped memory for boltzmann_forward.1']
    #allocation4 [shape = 's32[1]{0}', space=sflag, size = 0x4, scoped, tag = 'scoped memory for boltzmann_forward.1']
    #allocation5 [shape = 'u8[16384]{0}', space=vmem, size = 0x4000, scoped, tag = 'input window, operand 1, single buffered']
    #allocation6 [shape = 's32[1]{0}', space=sflag, size = 0x4, scoped, tag = 'scoped memory for boltzmann_forward.1']
    #allocation7 [shape = 'u8[512]{0}', space=vmem, size = 0x400, scoped, tag = 'input window, operand 2, single buffered']
    #allocation8 [shape = 'u8[16384]{0}', space=vmem, size = 0x4000, scoped, tag = 'output window, operand 0, single buffered']
    %8 = vsyncpa [#allocation3], 0
    %9 = vsyncpa [#allocation6], 0
    %10 = vsyncpa [#allocation4], 0
    // Predicated region
    $region2: #{boltzmann_forward.1} parent=1 // pred_check
      _
    $region3: #{boltzmann_forward.1} parent=1 // pred_check_branch
      %12 = sbr.rel (0) target = $region5
    $region4: #{boltzmann_forward.1} parent=1 // pred_region
      %14 = vsyncadd [#allocation3], 0
      %s15 = sshll.u32 %s0, 4
      %s16 = int_to_ptr.hbm [resolvable:$true] %s15
      %s17 = sshll.u32 [#allocation2], 4
      %s18 = int_to_ptr.vmem [resolvable:$true] %s17
      %23 = dma.hbm_to_vmem [thread:$0]  %s16, 512, %s18, [#allocation3], 128, 128, 8
    $region5: #{boltzmann_forward.1} parent=1 // pred_fallthru
      _
    // Predicated region
    $region6: #{boltzmann_forward.1} parent=1 // pred_check
      _
    $region7: #{boltzmann_forward.1} parent=1 // pred_check_branch
      %25 = sbr.rel (0) target = $region9
    $region8: #{boltzmann_forward.1} parent=1 // pred_region
      %27 = vsyncadd [#allocation6], 0
      %s28 = sshll.u32 %s1, 4
      %s29 = int_to_ptr.hbm [resolvable:$true] %s28
      %s30 = sshll.u32 [#allocation5], 4
      %s31 = int_to_ptr.vmem [resolvable:$true] %s30
      %36 = dma.hbm_to_vmem [thread:$0]  %s29, 512, %s31, [#allocation6], 128, 128, 8
    $region9: #{boltzmann_forward.1} parent=1 // pred_fallthru
      _
    // Predicated region
    $region10: #{boltzmann_forward.1} parent=1 // pred_check
      _
    $region11: #{boltzmann_forward.1} parent=1 // pred_check_branch
      %38 = sbr.rel (0) target = $region13
    $region12: #{boltzmann_forward.1} parent=1 // pred_region
      %40 = vsyncadd [#allocation6], 0
      %s42 = sshll.u32 %s2, 4
      %s43 = int_to_ptr.hbm [resolvable:$true] %s42
      %s44 = sshll.u32 [#allocation7], 4
      %s45 = int_to_ptr.vmem [resolvable:$true] %s44
      %47 = dma.hbm_to_vmem [thread:$0]  %s43, 16, %s45, [#allocation6]
    $region13: #{boltzmann_forward.1} parent=1 // pred_fallthru
      _
    // Predicated region
    $region14: #{boltzmann_forward.1} parent=1 // pred_check
      _
    $region15: #{boltzmann_forward.1} parent=1 // pred_check_branch
      %49 = sbr.rel (0) target = $region17
    $region16: #{boltzmann_forward.1} parent=1 // pred_region
      %51 = dma.done [#allocation3], 512
    $region17: #{boltzmann_forward.1} parent=1 // pred_fallthru
      _
    // Predicated region
    $region18: #{boltzmann_forward.1} parent=1 // pred_check
      _
    $region19: #{boltzmann_forward.1} parent=1 // pred_check_branch
      %53 = sbr.rel (0) target = $region21
    $region20: #{boltzmann_forward.1} parent=1 // pred_region
      %55 = dma.done [#allocation6], 512
    $region21: #{boltzmann_forward.1} parent=1 // pred_fallthru
      _
    // Predicated region
    $region22: #{boltzmann_forward.1} parent=1 // pred_check
      _
    $region23: #{boltzmann_forward.1} parent=1 // pred_check_branch
      %57 = sbr.rel (0) target = $region25
    $region24: #{boltzmann_forward.1} parent=1 // pred_region
      %59 = dma.done [#allocation6], 16
    $region25: #{boltzmann_forward.1} parent=1 // pred_fallthru
      _
    %p60 = scmp.eq.s32.totalorder 0, 0
    // Predicated region
    $region26: #{boltzmann_forward.1} parent=1 // pred_check
      %p61 = pneg %p60
    $region27: #{boltzmann_forward.1} parent=1 // pred_check_branch
      %63 = sbr.rel (%p61) target = $region29
    $region28: #{boltzmann_forward.1} parent=1 // pred_region
      %vm64 = vcmask 261120
      %65 = vst.msk [vmem:[#allocation8] sm:$0xff] %vm64, 0.0
      %66 = vst.msk [vmem:[#allocation8 + $0x8] sm:$0xff] %vm64, 0.0
      %67 = vst.msk [vmem:[#allocation8 + $0x10] sm:$0xff] %vm64, 0.0
      %68 = vst.msk [vmem:[#allocation8 + $0x18] sm:$0xff] %vm64, 0.0
    $region29: #{boltzmann_forward.1} parent=1 // pred_fallthru
      _
    %v69 = vld [vmem:[#allocation8] sm:$0xff]
    %v70 = vld [vmem:[#allocation8 + $0x8] sm:$0xff]
    %v71 = vld [vmem:[#allocation8 + $0x10] sm:$0xff]
    %v72 = vld [vmem:[#allocation8 + $0x18] sm:$0xff]
    %v73 = vld [vmem:[#allocation2] sm:$0xff]
    %v74 = vld [vmem:[#allocation2 + $0x8] sm:$0xff]
    %v75 = vld [vmem:[#allocation2 + $0x10] sm:$0xff]
    %v76 = vld [vmem:[#allocation2 + $0x18] sm:$0xff]
    %v77 = vld [vmem:[#allocation5] sm:$0xff]
    %v78 = vld [vmem:[#allocation5 + $0x8] sm:$0xff]
    %v79 = vld [vmem:[#allocation5 + $0x10] sm:$0xff]
    %v80 = vld [vmem:[#allocation5 + $0x18] sm:$0xff]
    %81 = vmatpush.xpose.msra.mxu0 0.0
    %82 = vmatpush.xpose.msra.mxu0 0.0
    %83 = vmatpush.xpose.msra.mxu0 0.0
    %84 = vmatpush.xpose.msra.mxu0 0.0
    %85 = vmatpush.xpose.msra.mxu0 0.0
    %86 = vmatpush.xpose.msra.mxu0 0.0
    %87 = vmatpush.xpose.msra.mxu0 0.0
    %88 = vmatpush.xpose.msra.mxu0 0.0
    %89 = vmatpush.xpose.msra.mxu0 0.0
    %90 = vmatpush.xpose.msra.mxu0 0.0
    %91 = vmatpush.xpose.msra.mxu0 0.0
    %92 = vmatpush.xpose.msra.mxu0 0.0
    %v93 = vand.u32 %v80, 4294901760
    %94 = vmatpush.xpose.msra.mxu0 %v93
    %v95 = vand.u32 %v79, 4294901760
    %96 = vmatpush.xpose.msra.mxu0 %v95
    %v97 = vand.u32 %v78, 4294901760
    %98 = vmatpush.xpose.msra.mxu0 %v97
    %v99 = vand.u32 %v77, 4294901760
    %100 = vmatpush.xpose.msra.mxu0 %v99
    %v101 = vand.u32 %v73, 4294901760
    %v102 = vsub.f32 %v73, %v101
    %v103 = vand.u32 %v102, 4294901760
    %v104 = vsub.f32 %v102, %v103
    %v105 = vand.u32 %v104, 4294901760
    %106 = vmatmul.f32.gmra.mxu0 %v105
    %v107 = vpop.f32.mrf.mxu0
    %v108 = vadd.f32 0.0, %v107
    %v109 = vand.u32 %v74, 4294901760
    %v110 = vsub.f32 %v74, %v109
    %v111 = vand.u32 %v110, 4294901760
    %v112 = vsub.f32 %v110, %v111
    %v113 = vand.u32 %v112, 4294901760
    %114 = vmatmul.f32.gmra.mxu0 %v113
    %v115 = vpop.f32.mrf.mxu0
    %v116 = vadd.f32 0.0, %v115
    %v117 = vand.u32 %v75, 4294901760
    %v118 = vsub.f32 %v75, %v117
    %v119 = vand.u32 %v118, 4294901760
    %v120 = vsub.f32 %v118, %v119
    %v121 = vand.u32 %v120, 4294901760
    %122 = vmatmul.f32.gmra.mxu0 %v121
    %v123 = vpop.f32.mrf.mxu0
    %v124 = vadd.f32 0.0, %v123
    %v125 = vand.u32 %v76, 4294901760
    %v126 = vsub.f32 %v76, %v125
    %v127 = vand.u32 %v126, 4294901760
    %v128 = vsub.f32 %v126, %v127
    %v129 = vand.u32 %v128, 4294901760
    %130 = vmatmul.f32.gmra.mxu0 %v129
    %v131 = vpop.f32.mrf.mxu0
    %v132 = vadd.f32 0.0, %v131
    %133 = vdwg.mxu0
    %134 = vmatpush.xpose.msra.mxu0 0.0
    %135 = vmatpush.xpose.msra.mxu0 0.0
    %136 = vmatpush.xpose.msra.mxu0 0.0
    %137 = vmatpush.xpose.msra.mxu0 0.0
    %138 = vmatpush.xpose.msra.mxu0 0.0
    %139 = vmatpush.xpose.msra.mxu0 0.0
    %140 = vmatpush.xpose.msra.mxu0 0.0
    %141 = vmatpush.xpose.msra.mxu0 0.0
    %142 = vmatpush.xpose.msra.mxu0 0.0
    %143 = vmatpush.xpose.msra.mxu0 0.0
    %144 = vmatpush.xpose.msra.mxu0 0.0
    %145 = vmatpush.xpose.msra.mxu0 0.0
    %v146 = vand.u32 %v80, 4294901760
    %v147 = vsub.f32 %v80, %v146
    %v148 = vand.u32 %v147, 4294901760
    %v149 = vsub.f32 %v147, %v148
    %v150 = vand.u32 %v149, 4294901760
    %151 = vmatpush.xpose.msra.mxu0 %v150
    %v152 = vand.u32 %v79, 4294901760
    %v153 = vsub.f32 %v79, %v152
    %v154 = vand.u32 %v153, 4294901760
    %v155 = vsub.f32 %v153, %v154
    %v156 = vand.u32 %v155, 4294901760
    %157 = vmatpush.xpose.msra.mxu0 %v156
    %v158 = vand.u32 %v78, 4294901760
    %v159 = vsub.f32 %v78, %v158
    %v160 = vand.u32 %v159, 4294901760
    %v161 = vsub.f32 %v159, %v160
    %v162 = vand.u32 %v161, 4294901760
    %163 = vmatpush.xpose.msra.mxu0 %v162
    %v164 = vand.u32 %v77, 4294901760
    %v165 = vsub.f32 %v77, %v164
    %v166 = vand.u32 %v165, 4294901760
    %v167 = vsub.f32 %v165, %v166
    %v168 = vand.u32 %v167, 4294901760
    %169 = vmatpush.xpose.msra.mxu0 %v168
    %v170 = vand.u32 %v73, 4294901760
    %171 = vmatmul.f32.gmra.mxu0 %v170
    %v172 = vpop.f32.mrf.mxu0
    %v173 = vadd.f32 %v108, %v172
    %v174 = vand.u32 %v74, 4294901760
    %175 = vmatmul.f32.gmra.mxu0 %v174
    %v176 = vpop.f32.mrf.mxu0
    %v177 = vadd.f32 %v116, %v176
    %v178 = vand.u32 %v75, 4294901760
    %179 = vmatmul.f32.gmra.mxu0 %v178
    %v180 = vpop.f32.mrf.mxu0
    %v181 = vadd.f32 %v124, %v180
    %v182 = vand.u32 %v76, 4294901760
    %183 = vmatmul.f32.gmra.mxu0 %v182
    %v184 = vpop.f32.mrf.mxu0
    %v185 = vadd.f32 %v132, %v184
    %186 = vdwg.mxu0
    %187 = vmatpush.xpose.msra.mxu0 0.0
    %188 = vmatpush.xpose.msra.mxu0 0.0
    %189 = vmatpush.xpose.msra.mxu0 0.0
    %190 = vmatpush.xpose.msra.mxu0 0.0
    %191 = vmatpush.xpose.msra.mxu0 0.0
    %192 = vmatpush.xpose.msra.mxu0 0.0
    %193 = vmatpush.xpose.msra.mxu0 0.0
    %194 = vmatpush.xpose.msra.mxu0 0.0
    %195 = vmatpush.xpose.msra.mxu0 0.0
    %196 = vmatpush.xpose.msra.mxu0 0.0
    %197 = vmatpush.xpose.msra.mxu0 0.0
    %198 = vmatpush.xpose.msra.mxu0 0.0
    %v199 = vand.u32 %v80, 4294901760
    %v200 = vsub.f32 %v80, %v199
    %201 = vmatpush.xpose.msra.mxu0 %v200
    %v202 = vand.u32 %v79, 4294901760
    %v203 = vsub.f32 %v79, %v202
    %204 = vmatpush.xpose.msra.mxu0 %v203
    %v205 = vand.u32 %v78, 4294901760
    %v206 = vsub.f32 %v78, %v205
    %207 = vmatpush.xpose.msra.mxu0 %v206
    %v208 = vand.u32 %v77, 4294901760
    %v209 = vsub.f32 %v77, %v208
    %210 = vmatpush.xpose.msra.mxu0 %v209
    %v211 = vand.u32 %v73, 4294901760
    %v212 = vsub.f32 %v73, %v211
    %213 = vmatmul.f32.gmra.mxu0 %v212
    %v214 = vpop.f32.mrf.mxu0
    %v215 = vadd.f32 %v173, %v214
    %v216 = vand.u32 %v74, 4294901760
    %v217 = vsub.f32 %v74, %v216
    %218 = vmatmul.f32.gmra.mxu0 %v217
    %v219 = vpop.f32.mrf.mxu0
    %v220 = vadd.f32 %v177, %v219
    %v221 = vand.u32 %v75, 4294901760
    %v222 = vsub.f32 %v75, %v221
    %223 = vmatmul.f32.gmra.mxu0 %v222
    %v224 = vpop.f32.mrf.mxu0
    %v225 = vadd.f32 %v181, %v224
    %v226 = vand.u32 %v76, 4294901760
    %v227 = vsub.f32 %v76, %v226
    %228 = vmatmul.f32.gmra.mxu0 %v227
    %v229 = vpop.f32.mrf.mxu0
    %v230 = vadd.f32 %v185, %v229
    %231 = vdwg.mxu0
    %232 = vmatpush.xpose.msra.mxu0 0.0
    %233 = vmatpush.xpose.msra.mxu0 0.0
    %234 = vmatpush.xpose.msra.mxu0 0.0
    %235 = vmatpush.xpose.msra.mxu0 0.0
    %236 = vmatpush.xpose.msra.mxu0 0.0
    %237 = vmatpush.xpose.msra.mxu0 0.0
    %238 = vmatpush.xpose.msra.mxu0 0.0
    %239 = vmatpush.xpose.msra.mxu0 0.0
    %240 = vmatpush.xpose.msra.mxu0 0.0
    %241 = vmatpush.xpose.msra.mxu0 0.0
    %242 = vmatpush.xpose.msra.mxu0 0.0
    %243 = vmatpush.xpose.msra.mxu0 0.0
    %v244 = vand.u32 %v80, 4294901760
    %245 = vmatpush.xpose.msra.mxu0 %v244
    %v246 = vand.u32 %v79, 4294901760
    %247 = vmatpush.xpose.msra.mxu0 %v246
    %v248 = vand.u32 %v78, 4294901760
    %249 = vmatpush.xpose.msra.mxu0 %v248
    %v250 = vand.u32 %v77, 4294901760
    %251 = vmatpush.xpose.msra.mxu0 %v250
    %v252 = vand.u32 %v73, 4294901760
    %v253 = vsub.f32 %v73, %v252
    %v254 = vand.u32 %v253, 4294901760
    %255 = vmatmul.f32.gmra.mxu0 %v254
    %v256 = vpop.f32.mrf.mxu0
    %v257 = vadd.f32 %v215, %v256
    %v258 = vand.u32 %v74, 4294901760
    %v259 = vsub.f32 %v74, %v258
    %v260 = vand.u32 %v259, 4294901760
    %261 = vmatmul.f32.gmra.mxu0 %v260
    %v262 = vpop.f32.mrf.mxu0
    %v263 = vadd.f32 %v220, %v262
    %v264 = vand.u32 %v75, 4294901760
    %v265 = vsub.f32 %v75, %v264
    %v266 = vand.u32 %v265, 4294901760
    %267 = vmatmul.f32.gmra.mxu0 %v266
    %v268 = vpop.f32.mrf.mxu0
    %v269 = vadd.f32 %v225, %v268
    %v270 = vand.u32 %v76, 4294901760
    %v271 = vsub.f32 %v76, %v270
    %v272 = vand.u32 %v271, 4294901760
    %273 = vmatmul.f32.gmra.mxu0 %v272
    %v274 = vpop.f32.mrf.mxu0
    %v275 = vadd.f32 %v230, %v274
    %276 = vdwg.mxu0
    %277 = vmatpush.xpose.msra.mxu0 0.0
    %278 = vmatpush.xpose.msra.mxu0 0.0
    %279 = vmatpush.xpose.msra.mxu0 0.0
    %280 = vmatpush.xpose.msra.mxu0 0.0
    %281 = vmatpush.xpose.msra.mxu0 0.0
    %282 = vmatpush.xpose.msra.mxu0 0.0
    %283 = vmatpush.xpose.msra.mxu0 0.0
    %284 = vmatpush.xpose.msra.mxu0 0.0
    %285 = vmatpush.xpose.msra.mxu0 0.0
    %286 = vmatpush.xpose.msra.mxu0 0.0
    %287 = vmatpush.xpose.msra.mxu0 0.0
    %288 = vmatpush.xpose.msra.mxu0 0.0
    %v289 = vand.u32 %v80, 4294901760
    %v290 = vsub.f32 %v80, %v289
    %v291 = vand.u32 %v290, 4294901760
    %292 = vmatpush.xpose.msra.mxu0 %v291
    %v293 = vand.u32 %v79, 4294901760
    %v294 = vsub.f32 %v79, %v293
    %v295 = vand.u32 %v294, 4294901760
    %296 = vmatpush.xpose.msra.mxu0 %v295
    %v297 = vand.u32 %v78, 4294901760
    %v298 = vsub.f32 %v78, %v297
    %v299 = vand.u32 %v298, 4294901760
    %300 = vmatpush.xpose.msra.mxu0 %v299
    %v301 = vand.u32 %v77, 4294901760
    %v302 = vsub.f32 %v77, %v301
    %v303 = vand.u32 %v302, 4294901760
    %304 = vmatpush.xpose.msra.mxu0 %v303
    %v305 = vand.u32 %v73, 4294901760
    %306 = vmatmul.f32.gmra.mxu0 %v305
    %v307 = vpop.f32.mrf.mxu0
    %v308 = vadd.f32 %v257, %v307
    %v309 = vand.u32 %v74, 4294901760
    %310 = vmatmul.f32.gmra.mxu0 %v309
    %v311 = vpop.f32.mrf.mxu0
    %v312 = vadd.f32 %v263, %v311
    %v313 = vand.u32 %v75, 4294901760
    %314 = vmatmul.f32.gmra.mxu0 %v313
    %v315 = vpop.f32.mrf.mxu0
    %v316 = vadd.f32 %v269, %v315
    %v317 = vand.u32 %v76, 4294901760
    %318 = vmatmul.f32.gmra.mxu0 %v317
    %v319 = vpop.f32.mrf.mxu0
    %v320 = vadd.f32 %v275, %v319
    %321 = vdwg.mxu0
    %322 = vmatpush.xpose.msra.mxu0 0.0
    %323 = vmatpush.xpose.msra.mxu0 0.0
    %324 = vmatpush.xpose.msra.mxu0 0.0
    %325 = vmatpush.xpose.msra.mxu0 0.0
    %326 = vmatpush.xpose.msra.mxu0 0.0
    %327 = vmatpush.xpose.msra.mxu0 0.0
    %328 = vmatpush.xpose.msra.mxu0 0.0
    %329 = vmatpush.xpose.msra.mxu0 0.0
    %330 = vmatpush.xpose.msra.mxu0 0.0
    %331 = vmatpush.xpose.msra.mxu0 0.0
    %332 = vmatpush.xpose.msra.mxu0 0.0
    %333 = vmatpush.xpose.msra.mxu0 0.0
    %v334 = vand.u32 %v80, 4294901760
    %335 = vmatpush.xpose.msra.mxu0 %v334
    %v336 = vand.u32 %v79, 4294901760
    %337 = vmatpush.xpose.msra.mxu0 %v336
    %v338 = vand.u32 %v78, 4294901760
    %339 = vmatpush.xpose.msra.mxu0 %v338
    %v340 = vand.u32 %v77, 4294901760
    %341 = vmatpush.xpose.msra.mxu0 %v340
    %v342 = vand.u32 %v73, 4294901760
    %343 = vmatmul.f32.gmra.mxu0 %v342
    %v344 = vpop.f32.mrf.mxu0
    %v345 = vadd.f32 %v308, %v344
    %v346 = vand.u32 %v74, 4294901760
    %347 = vmatmul.f32.gmra.mxu0 %v346
    %v348 = vpop.f32.mrf.mxu0
    %v349 = vadd.f32 %v312, %v348
    %v350 = vand.u32 %v75, 4294901760
    %351 = vmatmul.f32.gmra.mxu0 %v350
    %v352 = vpop.f32.mrf.mxu0
    %v353 = vadd.f32 %v316, %v352
    %v354 = vand.u32 %v76, 4294901760
    %355 = vmatmul.f32.gmra.mxu0 %v354
    %v356 = vpop.f32.mrf.mxu0
    %v357 = vadd.f32 %v320, %v356
    %358 = vdwg.mxu0
    %v359 = vadd.f32 %v69, %v345
    %v360 = vadd.f32 %v70, %v349
    %v361 = vadd.f32 %v71, %v353
    %v362 = vadd.f32 %v72, %v357
    %vm363 = vcmask 261120
    %364 = vst.msk [vmem:[#allocation8] sm:$0xff] %vm363, %v359
    %365 = vst.msk [vmem:[#allocation8 + $0x8] sm:$0xff] %vm363, %v360
    %366 = vst.msk [vmem:[#allocation8 + $0x10] sm:$0xff] %vm363, %v361
    %367 = vst.msk [vmem:[#allocation8 + $0x18] sm:$0xff] %vm363, %v362
    // Predicated region
    $region30: #{boltzmann_forward.1} parent=1 // pred_check
      %p368 = pneg %p60
    $region31: #{boltzmann_forward.1} parent=1 // pred_check_branch
      %370 = sbr.rel (%p368) target = $region33
    $region32: #{boltzmann_forward.1} parent=1 // pred_region
      %v371 = vld [vmem:[#allocation8] sm:$0xff]
      %v372 = vld [vmem:[#allocation8 + $0x8] sm:$0xff]
      %v373 = vld [vmem:[#allocation8 + $0x10] sm:$0xff]
      %v374 = vld [vmem:[#allocation8 + $0x18] sm:$0xff]
      %v375 = vld [vmem:[#allocation7] sm:$0x1]
      %v377 = vperm.slane %v375, 0
      %v379 = vadd.f32 %v371, %v377
      %v380 = vadd.f32 %v372, %v377
      %v381 = vadd.f32 %v373, %v377
      %v382 = vadd.f32 %v374, %v377
      %v383 = vxor.u32 %v379, 2147483648
      %v384 = vxor.u32 %v380, 2147483648
      %v385 = vxor.u32 %v381, 2147483648
      %v386 = vxor.u32 %v382, 2147483648
      %v387 = vmul.f32 %v383, 1.442695
      %v388 = vpow.pop %v387
      %v389 = vmul.f32 %v384, 1.442695
      %v390 = vpow.pop %v389
      %v391 = vmul.f32 %v385, 1.442695
      %v392 = vpow.pop %v391
      %v393 = vmul.f32 %v386, 1.442695
      %v394 = vpow.pop %v393
      %v395 = vadd.f32 %v388, 1.0
      %v396 = vadd.f32 %v390, 1.0
      %v397 = vadd.f32 %v392, 1.0
      %v398 = vadd.f32 %v394, 1.0
      %v399 = vrcp.pop %v395
      %v400 = vmul.f32 %v395, %v399
      %v401 = vsub.f32 1.0, %v400
      %v402 = vmul.f32 %v399, %v401
      %v403 = vadd.f32 %v399, %v402
      %vm404 = vweird.f32 %v395
      %vm405 = vweird.f32 %v399
      %vm406 = vmor %vm404, %vm405
      %v407 = vsel %vm406, %v399, %v403
      %v408 = vand.u32 2147483647, %v395
      %vm409 = vcmp.eq.f32.partialorder %v408, 8.507059e+37
      %v410 = vand.u32 %v395, 2147483648
      %v411 = vor.u32 1.1754944e-38, %v410
      %v412 = vsel %vm409, %v411, %v407
      %v413 = vmul.f32 1.0, %v412
      %v414 = vrcp.pop %v396
      %v415 = vmul.f32 %v396, %v414
      %v416 = vsub.f32 1.0, %v415
      %v417 = vmul.f32 %v414, %v416
      %v418 = vadd.f32 %v414, %v417
      %vm419 = vweird.f32 %v396
      %vm420 = vweird.f32 %v414
      %vm421 = vmor %vm419, %vm420
      %v422 = vsel %vm421, %v414, %v418
      %v423 = vand.u32 2147483647, %v396
      %vm424 = vcmp.eq.f32.partialorder %v423, 8.507059e+37
      %v425 = vand.u32 %v396, 2147483648
      %v426 = vor.u32 1.1754944e-38, %v425
      %v427 = vsel %vm424, %v426, %v422
      %v428 = vmul.f32 1.0, %v427
      %v429 = vrcp.pop %v397
      %v430 = vmul.f32 %v397, %v429
      %v431 = vsub.f32 1.0, %v430
      %v432 = vmul.f32 %v429, %v431
      %v433 = vadd.f32 %v429, %v432
      %vm434 = vweird.f32 %v397
      %vm435 = vweird.f32 %v429
      %vm436 = vmor %vm434, %vm435
      %v437 = vsel %vm436, %v429, %v433
      %v438 = vand.u32 2147483647, %v397
      %vm439 = vcmp.eq.f32.partialorder %v438, 8.507059e+37
      %v440 = vand.u32 %v397, 2147483648
      %v441 = vor.u32 1.1754944e-38, %v440
      %v442 = vsel %vm439, %v441, %v437
      %v443 = vmul.f32 1.0, %v442
      %v444 = vrcp.pop %v398
      %v445 = vmul.f32 %v398, %v444
      %v446 = vsub.f32 1.0, %v445
      %v447 = vmul.f32 %v444, %v446
      %v448 = vadd.f32 %v444, %v447
      %vm449 = vweird.f32 %v398
      %vm450 = vweird.f32 %v444
      %vm451 = vmor %vm449, %vm450
      %v452 = vsel %vm451, %v444, %v448
      %v453 = vand.u32 2147483647, %v398
      %vm454 = vcmp.eq.f32.partialorder %v453, 8.507059e+37
      %v455 = vand.u32 %v398, 2147483648
      %v456 = vor.u32 1.1754944e-38, %v455
      %v457 = vsel %vm454, %v456, %v452
      %v458 = vmul.f32 1.0, %v457
      %459 = vst.msk [vmem:[#allocation8] sm:$0xff] %vm363, %v413
      %460 = vst.msk [vmem:[#allocation8 + $0x8] sm:$0xff] %vm363, %v428
      %461 = vst.msk [vmem:[#allocation8 + $0x10] sm:$0xff] %vm363, %v443
      %462 = vst.msk [vmem:[#allocation8 + $0x18] sm:$0xff] %vm363, %v458
    $region33: #{boltzmann_forward.1} parent=1 // pred_fallthru
      _
    // Predicated region
    $region34: #{boltzmann_forward.1} parent=1 // pred_check
      _
    $region35: #{boltzmann_forward.1} parent=1 // pred_check_branch
      %464 = sbr.rel (0) target = $region37
    $region36: #{boltzmann_forward.1} parent=1 // pred_region
      %466 = vsyncadd [#allocation4], 0
      %s467 = sshll.u32 [#allocation8], 4
      %s468 = int_to_ptr.vmem [resolvable:$true] %s467
      %s469 = sshll.u32 %s3, 4
      %s470 = int_to_ptr.hbm [resolvable:$true] %s469
      %475 = dma.vmem_to_hbm [thread:$0]  %s468, 512, %s470, [#allocation4], 128, 128, 8
    $region37: #{boltzmann_forward.1} parent=1 // pred_fallthru
      _
    // Predicated region
    $region38: #{boltzmann_forward.1} parent=1 // pred_check
      _
    $region39: #{boltzmann_forward.1} parent=1 // pred_check_branch
      %477 = sbr.rel (0) target = $region41
    $region40: #{boltzmann_forward.1} parent=1 // pred_region
      %479 = dma.done [#allocation4], 512
    $region41: #{boltzmann_forward.1} parent=1 // pred_fallthru
      _
    %480 = vsyncpa [#allocation3], 1
    %481 = vsyncpa [#allocation6], 1
    %482 = vsyncpa [#allocation4], 1

</llo_original>
